<compile_context>
chip_gen: v7x
topology: tpu7x:2x2x1
jax: 0.10.0
libtpu: 0.0.40
codegen_flags: <defaults>
</compile_context>

<pallas_src>
import jax
import jax.numpy as jnp
from jax import lax
from jax.experimental import pallas as pl
from jax.experimental.pallas import tpu as pltpu


def transition_kernel(x_ref, scale_ref, bias_ref, pw_ref, w_ref, o_ref):
    # x_ref:     (1, C*Ho, 2*W)  one image; row c*Ho+g holds input rows 2g, 2g+1 of channel c
    # scale_ref: (C*Ho, 1)       folded BN scale (repeated per channel row-block)
    # bias_ref:  (C*Ho, 1)       folded BN bias
    # pw_ref:    (W, Wo) bf16    horizontal pair-sum / stride-2 downsample matrix (0/1)
    # w_ref:     (Cout, C) f32   1x1 conv weight with the 0.25 pool factor folded (SMEM)
    # o_ref:     (1, Cout, Ho, Wo)  output block, already NCHW
    Cout, C = w_ref.shape
    Ho = x_ref.shape[1] // C
    W, Wo = pw_ref.shape

    x = x_ref[0]                                                   # (C*Ho, 2W)
    a = jnp.maximum(x * scale_ref[...] + bias_ref[...], 0.0)       # BN + ReLU   (VPU)
    t = a[:, :W] + a[:, W:]                                        # vertical 2-row sum (VPU)
    # horizontal pair-sum + downsample as a tiny bf16 matmul, f32 accumulation
    pooled = jnp.dot(t.astype(jnp.bfloat16), pw_ref[...],
                     preferred_element_type=jnp.float32)           # (C*Ho, Wo)

    # 1x1 conv on the pooled map: C, Cout are small -> VPU scalar-vector MACs.
    blocks = [pooled[c * Ho:(c + 1) * Ho, :] for c in range(C)]    # C x (Ho, Wo)
    rows = []
    for o in range(Cout):
        acc = w_ref[o, 0] * blocks[0]
        for c in range(1, C):
            acc = acc + w_ref[o, c] * blocks[c]
        rows.append(acc)
    o_ref[0] = jnp.stack(rows, axis=0).astype(o_ref.dtype)         # (Cout, Ho, Wo)


def transition_forward(x_nchw, gamma, beta, conv_w, eps=1e-5):
    N, C, H, W = x_nchw.shape
    Cout = conv_w.shape[0]
    Ho, Wo = H // 2, W // 2        # H, W must be even (avg_pool2d(2))

    x_nchw = x_nchw.astype(jnp.float32)

    # BatchNorm2d training-mode batch statistics (biased variance), computed in
    # one fused pass over x (sum and sum-of-squares from a single read).
    xr = x_nchw.reshape(N, C, H * W)                    # free reshape
    cnt = N * H * W
    s1 = jnp.sum(xr, axis=(0, 2))
    s2 = jnp.sum(xr * xr, axis=(0, 2))
    mean = s1 / cnt
    var = jnp.maximum(s2 / cnt - mean * mean, 0.0)
    scale = gamma.astype(jnp.float32) * lax.rsqrt(var + eps)       # (C,)
    bias = beta.astype(jnp.float32) - mean * scale                 # (C,)

    # Channel-major, pooling-friendly view: (N,C,H,W) -> (N, C*Ho, 2*W) is a
    # free contiguous reshape (row r = c*Ho + g holds image rows 2g and 2g+1).
    x_rows = x_nchw.reshape(N, C * Ho, 2 * W)

    scale_rows = jnp.repeat(scale, Ho).reshape(C * Ho, 1)
    bias_rows = jnp.repeat(bias, Ho).reshape(C * Ho, 1)

    # (W, Wo) horizontal pair-sum matrix: column v sums input columns 2v, 2v+1.
    pw = (jnp.arange(W)[:, None] // 2 == jnp.arange(Wo)[None, :]).astype(jnp.bfloat16)

    # 1x1 conv weight with the 2x2 average-pool 0.25 factor folded in.
    w2 = conv_w.reshape(Cout, C).astype(jnp.float32) * 0.25

    out = pl.pallas_call(
        transition_kernel,
        out_shape=jax.ShapeDtypeStruct((N, Cout, Ho, Wo), jnp.float32),
        grid=(N,),
        in_specs=[
            pl.BlockSpec((1, C * Ho, 2 * W), lambda n: (n, 0, 0)),
            pl.BlockSpec((C * Ho, 1), lambda n: (0, 0)),
            pl.BlockSpec((C * Ho, 1), lambda n: (0, 0)),
            pl.BlockSpec((W, Wo), lambda n: (0, 0)),
            pl.BlockSpec(memory_space=pltpu.MemorySpace.SMEM),   # conv weight scalars
        ],
        out_specs=pl.BlockSpec((1, Cout, Ho, Wo), lambda n: (n, 0, 0, 0)),
        compiler_params=pltpu.CompilerParams(dimension_semantics=("parallel",)),
    )(x_rows, scale_rows, bias_rows, pw, w2)

    return out   # already NCHW: (N, Cout, Ho, Wo)


def transition_ref(x, gamma, beta, conv_w, eps=1e-5):
    # Pure-JAX reference replicating the PyTorch forward (training-mode BN).
    mean = jnp.mean(x, axis=(0, 2, 3), keepdims=True)
    var = jnp.var(x, axis=(0, 2, 3), keepdims=True)
    xn = (x - mean) / jnp.sqrt(var + eps)
    xn = xn * gamma.reshape(1, -1, 1, 1) + beta.reshape(1, -1, 1, 1)
    a = jnp.maximum(xn, 0.0)
    y = jnp.einsum('nchw,oc->nohw', a, conv_w.reshape(conv_w.shape[0], -1))
    N, Co, H, W = y.shape
    return y.reshape(N, Co, H // 2, 2, W // 2, 2).mean(axis=(3, 5))


if __name__ == "__main__":
    # Small shapes consistent with the module: nChannels=4, nOutChannels=8.
    N, C, H, W = 2, 4, 16, 16
    Cout = 8

    key = jax.random.PRNGKey(0)
    kx, kg, kb, kw = jax.random.split(key, 4)
    x = jax.random.normal(kx, (N, C, H, W), jnp.float32)
    gamma = 1.0 + 0.1 * jax.random.normal(kg, (C,), jnp.float32)   # bn1.weight
    beta = 0.1 * jax.random.normal(kb, (C,), jnp.float32)          # bn1.bias
    conv_w = jax.random.normal(kw, (Cout, C, 1, 1), jnp.float32) * 0.1  # conv1.weight

    out = jax.jit(transition_forward)(x, gamma, beta, conv_w)
    out = jax.block_until_ready(out)

    ref = transition_ref(x, gamma, beta, conv_w)
    assert out.shape == (N, Cout, H // 2, W // 2), out.shape
    # bf16 operands in the pooling matmul -> relaxed tolerance vs the f32 reference.
    assert jnp.allclose(out, ref, atol=1e-2, rtol=1e-2), \
        float(jnp.max(jnp.abs(out - ref)))

    print("KERNEL_OK")
</pallas_src>

<mosaic_0001>
module attributes {stable_mosaic.version = 11 : i64} {
  func.func @transition_kernel(%arg0: i32, %arg1: memref<1x32x32xf32, #tpu.memory_space<vmem>>, %arg2: memref<32x1xf32, #tpu.memory_space<vmem>>, %arg3: memref<32x1xf32, #tpu.memory_space<vmem>>, %arg4: memref<16x8xbf16, #tpu.memory_space<vmem>>, %arg5: memref<8x4xf32, #tpu.memory_space<smem>>, %arg6: memref<1x8x8x8xf32, #tpu.memory_space<vmem>>) attributes {dimension_semantics = [#tpu.dimension_semantics<parallel>], iteration_bounds = array<i64: 2>, scalar_prefetch = 0 : i64, scratch_operands = 0 : i64, tpu.core_type = #tpu.core_type<tc>, window_params = [{transform_indices = @transform_0, window_bounds = array<i64: 1, 32, 32>}, {pipeline_mode = #tpu.pipeline_mode<synchronous>, transform_indices = @transform_1, window_bounds = array<i64: 32, 1>}, {pipeline_mode = #tpu.pipeline_mode<synchronous>, transform_indices = @transform_2, window_bounds = array<i64: 32, 1>}, {pipeline_mode = #tpu.pipeline_mode<synchronous>, transform_indices = @transform_3, window_bounds = array<i64: 16, 8>}, {transform_indices = @transform_4, window_bounds = array<i64: 8, 4>}, {transform_indices = @transform_5, window_bounds = array<i64: 1, 8, 8, 8>}]} {
    %c0 = arith.constant 0 : index
    %c0_0 = arith.constant 0 : index
    %c0_1 = arith.constant 0 : index
    %0 = vector.load %arg1[%c0, %c0_0, %c0_1] : memref<1x32x32xf32, #tpu.memory_space<vmem>>, vector<1x32x32xf32>
    %1 = vector.shape_cast %0 : vector<1x32x32xf32> to vector<32x32xf32>
    %c0_2 = arith.constant 0 : index
    %c0_3 = arith.constant 0 : index
    %2 = vector.load %arg2[%c0_2, %c0_3] : memref<32x1xf32, #tpu.memory_space<vmem>>, vector<32x1xf32>
    %3 = vector.broadcast %2 : vector<32x1xf32> to vector<32x32xf32>
    %4 = arith.mulf %1, %3 : vector<32x32xf32>
    %c0_4 = arith.constant 0 : index
    %c0_5 = arith.constant 0 : index
    %5 = vector.load %arg3[%c0_4, %c0_5] : memref<32x1xf32, #tpu.memory_space<vmem>>, vector<32x1xf32>
    %6 = vector.broadcast %5 : vector<32x1xf32> to vector<32x32xf32>
    %7 = arith.addf %4, %6 : vector<32x32xf32>
    %cst = arith.constant 0.000000e+00 : f32
    %8 = vector.broadcast %cst : f32 to vector<32x32xf32>
    %9 = arith.maximumf %7, %8 : vector<32x32xf32>
    %10 = vector.extract_strided_slice %9 {offsets = [0, 0], sizes = [32, 16], strides = [1, 1]} : vector<32x32xf32> to vector<32x16xf32>
    %11 = vector.extract_strided_slice %9 {offsets = [0, 16], sizes = [32, 16], strides = [1, 1]} : vector<32x32xf32> to vector<32x16xf32>
    %12 = arith.addf %10, %11 : vector<32x16xf32>
    %13 = arith.truncf %12 : vector<32x16xf32> to vector<32x16xbf16>
    %c0_6 = arith.constant 0 : index
    %c0_7 = arith.constant 0 : index
    %14 = vector.load %arg4[%c0_6, %c0_7] : memref<16x8xbf16, #tpu.memory_space<vmem>>, vector<16x8xbf16>
    %cst_8 = arith.constant dense<0.000000e+00> : vector<32x8xf32>
    %15 = tpu.matmul %13, %14, %cst_8 {dimension_numbers = #tpu.dot_dimension_numbers<[1], [0], [0], [1], [0, 0, 1, 1], [], []>} : vector<32x16xbf16>, vector<16x8xbf16>, vector<32x8xf32> -> vector<32x8xf32>
    %16 = vector.extract_strided_slice %15 {offsets = [0, 0], sizes = [8, 8], strides = [1, 1]} : vector<32x8xf32> to vector<8x8xf32>
    %17 = vector.extract_strided_slice %15 {offsets = [8, 0], sizes = [8, 8], strides = [1, 1]} : vector<32x8xf32> to vector<8x8xf32>
    %18 = vector.extract_strided_slice %15 {offsets = [16, 0], sizes = [8, 8], strides = [1, 1]} : vector<32x8xf32> to vector<8x8xf32>
    %19 = vector.extract_strided_slice %15 {offsets = [24, 0], sizes = [8, 8], strides = [1, 1]} : vector<32x8xf32> to vector<8x8xf32>
    %c0_9 = arith.constant 0 : index
    %c0_10 = arith.constant 0 : index
    %20 = memref.load %arg5[%c0_9, %c0_10] : memref<8x4xf32, #tpu.memory_space<smem>>
    %21 = vector.broadcast %20 : f32 to vector<8x8xf32>
    %22 = arith.mulf %21, %16 : vector<8x8xf32>
    %c0_11 = arith.constant 0 : index
    %c1 = arith.constant 1 : index
    %23 = memref.load %arg5[%c0_11, %c1] : memref<8x4xf32, #tpu.memory_space<smem>>
    %24 = vector.broadcast %23 : f32 to vector<8x8xf32>
    %25 = arith.mulf %24, %17 : vector<8x8xf32>
    %26 = arith.addf %22, %25 : vector<8x8xf32>
    %c0_12 = arith.constant 0 : index
    %c2 = arith.constant 2 : index
    %27 = memref.load %arg5[%c0_12, %c2] : memref<8x4xf32, #tpu.memory_space<smem>>
    %28 = vector.broadcast %27 : f32 to vector<8x8xf32>
    %29 = arith.mulf %28, %18 : vector<8x8xf32>
    %30 = arith.addf %26, %29 : vector<8x8xf32>
    %c0_13 = arith.constant 0 : index
    %c3 = arith.constant 3 : index
    %31 = memref.load %arg5[%c0_13, %c3] : memref<8x4xf32, #tpu.memory_space<smem>>
    %32 = vector.broadcast %31 : f32 to vector<8x8xf32>
    %33 = arith.mulf %32, %19 : vector<8x8xf32>
    %34 = arith.addf %30, %33 : vector<8x8xf32>
    %c1_14 = arith.constant 1 : index
    %c0_15 = arith.constant 0 : index
    %35 = memref.load %arg5[%c1_14, %c0_15] : memref<8x4xf32, #tpu.memory_space<smem>>
    %36 = vector.broadcast %35 : f32 to vector<8x8xf32>
    %37 = arith.mulf %36, %16 : vector<8x8xf32>
    %c1_16 = arith.constant 1 : index
    %c1_17 = arith.constant 1 : index
    %38 = memref.load %arg5[%c1_16, %c1_17] : memref<8x4xf32, #tpu.memory_space<smem>>
    %39 = vector.broadcast %38 : f32 to vector<8x8xf32>
    %40 = arith.mulf %39, %17 : vector<8x8xf32>
    %41 = arith.addf %37, %40 : vector<8x8xf32>
    %c1_18 = arith.constant 1 : index
    %c2_19 = arith.constant 2 : index
    %42 = memref.load %arg5[%c1_18, %c2_19] : memref<8x4xf32, #tpu.memory_space<smem>>
    %43 = vector.broadcast %42 : f32 to vector<8x8xf32>
    %44 = arith.mulf %43, %18 : vector<8x8xf32>
    %45 = arith.addf %41, %44 : vector<8x8xf32>
    %c1_20 = arith.constant 1 : index
    %c3_21 = arith.constant 3 : index
    %46 = memref.load %arg5[%c1_20, %c3_21] : memref<8x4xf32, #tpu.memory_space<smem>>
    %47 = vector.broadcast %46 : f32 to vector<8x8xf32>
    %48 = arith.mulf %47, %19 : vector<8x8xf32>
    %49 = arith.addf %45, %48 : vector<8x8xf32>
    %c2_22 = arith.constant 2 : index
    %c0_23 = arith.constant 0 : index
    %50 = memref.load %arg5[%c2_22, %c0_23] : memref<8x4xf32, #tpu.memory_space<smem>>
    %51 = vector.broadcast %50 : f32 to vector<8x8xf32>
    %52 = arith.mulf %51, %16 : vector<8x8xf32>
    %c2_24 = arith.constant 2 : index
    %c1_25 = arith.constant 1 : index
    %53 = memref.load %arg5[%c2_24, %c1_25] : memref<8x4xf32, #tpu.memory_space<smem>>
    %54 = vector.broadcast %53 : f32 to vector<8x8xf32>
    %55 = arith.mulf %54, %17 : vector<8x8xf32>
    %56 = arith.addf %52, %55 : vector<8x8xf32>
    %c2_26 = arith.constant 2 : index
    %c2_27 = arith.constant 2 : index
    %57 = memref.load %arg5[%c2_26, %c2_27] : memref<8x4xf32, #tpu.memory_space<smem>>
    %58 = vector.broadcast %57 : f32 to vector<8x8xf32>
    %59 = arith.mulf %58, %18 : vector<8x8xf32>
    %60 = arith.addf %56, %59 : vector<8x8xf32>
    %c2_28 = arith.constant 2 : index
    %c3_29 = arith.constant 3 : index
    %61 = memref.load %arg5[%c2_28, %c3_29] : memref<8x4xf32, #tpu.memory_space<smem>>
    %62 = vector.broadcast %61 : f32 to vector<8x8xf32>
    %63 = arith.mulf %62, %19 : vector<8x8xf32>
    %64 = arith.addf %60, %63 : vector<8x8xf32>
    %c3_30 = arith.constant 3 : index
    %c0_31 = arith.constant 0 : index
    %65 = memref.load %arg5[%c3_30, %c0_31] : memref<8x4xf32, #tpu.memory_space<smem>>
    %66 = vector.broadcast %65 : f32 to vector<8x8xf32>
    %67 = arith.mulf %66, %16 : vector<8x8xf32>
    %c3_32 = arith.constant 3 : index
    %c1_33 = arith.constant 1 : index
    %68 = memref.load %arg5[%c3_32, %c1_33] : memref<8x4xf32, #tpu.memory_space<smem>>
    %69 = vector.broadcast %68 : f32 to vector<8x8xf32>
    %70 = arith.mulf %69, %17 : vector<8x8xf32>
    %71 = arith.addf %67, %70 : vector<8x8xf32>
    %c3_34 = arith.constant 3 : index
    %c2_35 = arith.constant 2 : index
    %72 = memref.load %arg5[%c3_34, %c2_35] : memref<8x4xf32, #tpu.memory_space<smem>>
    %73 = vector.broadcast %72 : f32 to vector<8x8xf32>
    %74 = arith.mulf %73, %18 : vector<8x8xf32>
    %75 = arith.addf %71, %74 : vector<8x8xf32>
    %c3_36 = arith.constant 3 : index
    %c3_37 = arith.constant 3 : index
    %76 = memref.load %arg5[%c3_36, %c3_37] : memref<8x4xf32, #tpu.memory_space<smem>>
    %77 = vector.broadcast %76 : f32 to vector<8x8xf32>
    %78 = arith.mulf %77, %19 : vector<8x8xf32>
    %79 = arith.addf %75, %78 : vector<8x8xf32>
    %c4 = arith.constant 4 : index
    %c0_38 = arith.constant 0 : index
    %80 = memref.load %arg5[%c4, %c0_38] : memref<8x4xf32, #tpu.memory_space<smem>>
    %81 = vector.broadcast %80 : f32 to vector<8x8xf32>
    %82 = arith.mulf %81, %16 : vector<8x8xf32>
    %c4_39 = arith.constant 4 : index
    %c1_40 = arith.constant 1 : index
    %83 = memref.load %arg5[%c4_39, %c1_40] : memref<8x4xf32, #tpu.memory_space<smem>>
    %84 = vector.broadcast %83 : f32 to vector<8x8xf32>
    %85 = arith.mulf %84, %17 : vector<8x8xf32>
    %86 = arith.addf %82, %85 : vector<8x8xf32>
    %c4_41 = arith.constant 4 : index
    %c2_42 = arith.constant 2 : index
    %87 = memref.load %arg5[%c4_41, %c2_42] : memref<8x4xf32, #tpu.memory_space<smem>>
    %88 = vector.broadcast %87 : f32 to vector<8x8xf32>
    %89 = arith.mulf %88, %18 : vector<8x8xf32>
    %90 = arith.addf %86, %89 : vector<8x8xf32>
    %c4_43 = arith.constant 4 : index
    %c3_44 = arith.constant 3 : index
    %91 = memref.load %arg5[%c4_43, %c3_44] : memref<8x4xf32, #tpu.memory_space<smem>>
    %92 = vector.broadcast %91 : f32 to vector<8x8xf32>
    %93 = arith.mulf %92, %19 : vector<8x8xf32>
    %94 = arith.addf %90, %93 : vector<8x8xf32>
    %c5 = arith.constant 5 : index
    %c0_45 = arith.constant 0 : index
    %95 = memref.load %arg5[%c5, %c0_45] : memref<8x4xf32, #tpu.memory_space<smem>>
    %96 = vector.broadcast %95 : f32 to vector<8x8xf32>
    %97 = arith.mulf %96, %16 : vector<8x8xf32>
    %c5_46 = arith.constant 5 : index
    %c1_47 = arith.constant 1 : index
    %98 = memref.load %arg5[%c5_46, %c1_47] : memref<8x4xf32, #tpu.memory_space<smem>>
    %99 = vector.broadcast %98 : f32 to vector<8x8xf32>
    %100 = arith.mulf %99, %17 : vector<8x8xf32>
    %101 = arith.addf %97, %100 : vector<8x8xf32>
    %c5_48 = arith.constant 5 : index
    %c2_49 = arith.constant 2 : index
    %102 = memref.load %arg5[%c5_48, %c2_49] : memref<8x4xf32, #tpu.memory_space<smem>>
    %103 = vector.broadcast %102 : f32 to vector<8x8xf32>
    %104 = arith.mulf %103, %18 : vector<8x8xf32>
    %105 = arith.addf %101, %104 : vector<8x8xf32>
    %c5_50 = arith.constant 5 : index
    %c3_51 = arith.constant 3 : index
    %106 = memref.load %arg5[%c5_50, %c3_51] : memref<8x4xf32, #tpu.memory_space<smem>>
    %107 = vector.broadcast %106 : f32 to vector<8x8xf32>
    %108 = arith.mulf %107, %19 : vector<8x8xf32>
    %109 = arith.addf %105, %108 : vector<8x8xf32>
    %c6 = arith.constant 6 : index
    %c0_52 = arith.constant 0 : index
    %110 = memref.load %arg5[%c6, %c0_52] : memref<8x4xf32, #tpu.memory_space<smem>>
    %111 = vector.broadcast %110 : f32 to vector<8x8xf32>
    %112 = arith.mulf %111, %16 : vector<8x8xf32>
    %c6_53 = arith.constant 6 : index
    %c1_54 = arith.constant 1 : index
    %113 = memref.load %arg5[%c6_53, %c1_54] : memref<8x4xf32, #tpu.memory_space<smem>>
    %114 = vector.broadcast %113 : f32 to vector<8x8xf32>
    %115 = arith.mulf %114, %17 : vector<8x8xf32>
    %116 = arith.addf %112, %115 : vector<8x8xf32>
    %c6_55 = arith.constant 6 : index
    %c2_56 = arith.constant 2 : index
    %117 = memref.load %arg5[%c6_55, %c2_56] : memref<8x4xf32, #tpu.memory_space<smem>>
    %118 = vector.broadcast %117 : f32 to vector<8x8xf32>
    %119 = arith.mulf %118, %18 : vector<8x8xf32>
    %120 = arith.addf %116, %119 : vector<8x8xf32>
    %c6_57 = arith.constant 6 : index
    %c3_58 = arith.constant 3 : index
    %121 = memref.load %arg5[%c6_57, %c3_58] : memref<8x4xf32, #tpu.memory_space<smem>>
    %122 = vector.broadcast %121 : f32 to vector<8x8xf32>
    %123 = arith.mulf %122, %19 : vector<8x8xf32>
    %124 = arith.addf %120, %123 : vector<8x8xf32>
    %c7 = arith.constant 7 : index
    %c0_59 = arith.constant 0 : index
    %125 = memref.load %arg5[%c7, %c0_59] : memref<8x4xf32, #tpu.memory_space<smem>>
    %126 = vector.broadcast %125 : f32 to vector<8x8xf32>
    %127 = arith.mulf %126, %16 : vector<8x8xf32>
    %c7_60 = arith.constant 7 : index
    %c1_61 = arith.constant 1 : index
    %128 = memref.load %arg5[%c7_60, %c1_61] : memref<8x4xf32, #tpu.memory_space<smem>>
    %129 = vector.broadcast %128 : f32 to vector<8x8xf32>
    %130 = arith.mulf %129, %17 : vector<8x8xf32>
    %131 = arith.addf %127, %130 : vector<8x8xf32>
    %c7_62 = arith.constant 7 : index
    %c2_63 = arith.constant 2 : index
    %132 = memref.load %arg5[%c7_62, %c2_63] : memref<8x4xf32, #tpu.memory_space<smem>>
    %133 = vector.broadcast %132 : f32 to vector<8x8xf32>
    %134 = arith.mulf %133, %18 : vector<8x8xf32>
    %135 = arith.addf %131, %134 : vector<8x8xf32>
    %c7_64 = arith.constant 7 : index
    %c3_65 = arith.constant 3 : index
    %136 = memref.load %arg5[%c7_64, %c3_65] : memref<8x4xf32, #tpu.memory_space<smem>>
    %137 = vector.broadcast %136 : f32 to vector<8x8xf32>
    %138 = arith.mulf %137, %19 : vector<8x8xf32>
    %139 = arith.addf %135, %138 : vector<8x8xf32>
    %140 = vector.shape_cast %34 : vector<8x8xf32> to vector<1x8x8xf32>
    %141 = vector.shape_cast %49 : vector<8x8xf32> to vector<1x8x8xf32>
    %142 = vector.shape_cast %64 : vector<8x8xf32> to vector<1x8x8xf32>
    %143 = vector.shape_cast %79 : vector<8x8xf32> to vector<1x8x8xf32>
    %144 = vector.shape_cast %94 : vector<8x8xf32> to vector<1x8x8xf32>
    %145 = vector.shape_cast %109 : vector<8x8xf32> to vector<1x8x8xf32>
    %146 = vector.shape_cast %124 : vector<8x8xf32> to vector<1x8x8xf32>
    %147 = vector.shape_cast %139 : vector<8x8xf32> to vector<1x8x8xf32>
    %148 = tpu.concatenate %140, %141, %142, %143, %144, %145, %146, %147 in 0 : vector<1x8x8xf32>, vector<1x8x8xf32>, vector<1x8x8xf32>, vector<1x8x8xf32>, vector<1x8x8xf32>, vector<1x8x8xf32>, vector<1x8x8xf32>, vector<1x8x8xf32> -> vector<8x8x8xf32>
    %c0_66 = arith.constant 0 : index
    %c0_67 = arith.constant 0 : index
    %c0_68 = arith.constant 0 : index
    %c0_69 = arith.constant 0 : index
    %149 = vector.load %arg6[%c0_66, %c0_67, %c0_68, %c0_69] : memref<1x8x8x8xf32, #tpu.memory_space<vmem>>, vector<1x8x8x8xf32>
    %150 = vector.shape_cast %149 : vector<1x8x8x8xf32> to vector<8x8x8xf32>
    %151 = vector.shape_cast %148 : vector<8x8x8xf32> to vector<1x8x8x8xf32>
    tpu.vector_store %arg6[%c0_66, %c0_67, %c0_68, %c0_69], %151 {strides = array<i32>} : memref<1x8x8x8xf32, #tpu.memory_space<vmem>>, vector<1x8x8x8xf32>,
    return
  }
  func.func @transform_0(%arg0: i32) -> (i32, i32, i32) {
    %c0_i32 = arith.constant 0 : i32
    %c0_i32_0 = arith.constant 0 : i32
    %c0_i32_1 = arith.constant 0 : i32
    return %arg0, %c0_i32, %c0_i32_0 : i32, i32, i32
  }
  func.func @transform_1(%arg0: i32) -> (i32, i32) {
    %c0_i32 = arith.constant 0 : i32
    %c0_i32_0 = arith.constant 0 : i32
    %c0_i32_1 = arith.constant 0 : i32
    return %c0_i32, %c0_i32_0 : i32, i32
  }
  func.func @transform_2(%arg0: i32) -> (i32, i32) {
    %c0_i32 = arith.constant 0 : i32
    %c0_i32_0 = arith.constant 0 : i32
    %c0_i32_1 = arith.constant 0 : i32
    return %c0_i32, %c0_i32_0 : i32, i32
  }
  func.func @transform_3(%arg0: i32) -> (i32, i32) {
    %c0_i32 = arith.constant 0 : i32
    %c0_i32_0 = arith.constant 0 : i32
    %c0_i32_1 = arith.constant 0 : i32
    return %c0_i32, %c0_i32_0 : i32, i32
  }
  func.func @transform_4(%arg0: i32) -> (i32, i32) {
    %c0_i32 = arith.constant 0 : i32
    %c0_i32_0 = arith.constant 0 : i32
    %c0_i32_1 = arith.constant 0 : i32
    return %c0_i32, %c0_i32_0 : i32, i32
  }
  func.func @transform_5(%arg0: i32) -> (i32, i32, i32, i32) {
    %c0_i32 = arith.constant 0 : i32
    %c0_i32_0 = arith.constant 0 : i32
    %c0_i32_1 = arith.constant 0 : i32
    %c0_i32_2 = arith.constant 0 : i32
    return %arg0, %c0_i32, %c0_i32_0, %c0_i32_1 : i32, i32, i32, i32
  }
}

</mosaic_0001>

<llo_original>
// kernel: transition_forward.1
$region0: #{transition_forward.1}
  #allocation0 [shape = 'u32[]', space=smem, size = 0x4, offset = 0x4, fixed_abs, tag = 'smem constant byte address 0x4 - core index']
  #allocation1 [shape = 'u32[144,128]{1,0:T(1,128)}', space=vmem, size = 0x12000, scoped, tag = 'internal scratch']
  %s0 = inlined_call_operand.vmem [shape: f32[2,32,32], index: 0, kind: input, shape index: {}]
  %s1 = inlined_call_operand.vmem [shape: f32[32,1], index: 1, kind: input, shape index: {}]
  %s2 = inlined_call_operand.vmem [shape: f32[32,1], index: 2, kind: input, shape index: {}]
  %s3 = inlined_call_operand.vmem [shape: bf16[16,8], index: 3, kind: input, shape index: {}]
  %s4 = inlined_call_operand.vmem [shape: f32[8,4], index: 4, kind: input, shape index: {}]
  %s5 = inlined_call_operand.hbm [shape: f32[2,8,8,8], index: 5, kind: output, shape index: {}]
  %s6 = sld [smem:[#allocation0]]
  $region57: #{transition_forward.1} parent=0
    _
  %s8 = ssub.s32 1, %s6
  %s9 = scalar_select 0, %s8, %s6
  $region1: #{transition_forward.1} parent=0
    #allocation2 [shape = 'u8[4096]{0}', space=smem, size = 0x1000, scoped, tag = 'input window, operand 4, single buffered']
    #allocation3 [shape = 's32[2]{0}', space=sflag, size = 0x8, scoped, tag = 'scoped memory for transition_forward.1']
    #allocation4 [shape = 's32[2]{0}', space=sflag, size = 0x8, scoped, tag = 'scoped memory for transition_forward.1']
    #allocation5 [shape = 'u8[65536]{0}', space=vmem, size = 0x10000, scoped, tag = 'output window, operand 0']
    %10 = vsyncpa [#allocation4], 0
    %11 = vsyncpa [#allocation3], 0
    %s12 = scalar_lea.sflag [#allocation3], 1
    %13 = vsyncpa %s12, 0
    loop: start=0, step=1, limit=4
    $region2: #{transition_forward.1} parent=1 // loop_pre_header
      _
    $region3: #{transition_forward.1} parent=1 // loop_header
      %s15 = sphi 0, %s19
      %p16 = scmp.ge.s32.totalorder %s15, 4
      %s25 = sphi 0, %s27
      %s28 = sphi 0, %s25
      %s29 = sphi 0, %s28
      %s45 = sphi 0, %s29
      %s49 = sphi 0, %s49
      %s51 = sphi 0, %s49
      %s52 = sphi 0, %s51
      %s66 = sphi 0, %s52
      %s70 = sphi 0, %s70
      %s72 = sphi 0, %s70
      %s73 = sphi 0, %s72
      %s87 = sphi 0, %s73
      %s91 = sphi 0, %s91
      %s93 = sphi 0, %s91
      %s94 = sphi 0, %s93
      %s108 = sphi 0, %s94
      %s112 = sphi 0, %s112
      %s114 = sphi 0, %s112
      %s115 = sphi 0, %s114
      %s129 = sphi 0, %s115
      %s135 = sphi 0, %s137
      %s138 = sphi 0, %s135
      %s139 = sphi 0, %s138
      %s155 = sphi 0, %s139
    $region4: #{transition_forward.1} parent=1 // loop_header_branch
      %18 = sbr.rel (%p16) target = $region8
    $region5: #{transition_forward.1} parent=1 // loop_body
      %s20 = ssub.s32 %s15, 1
      %s21 = ssub.s32 %s15, 2
      %s22 = sadd.s32 %s15, 1
      %s23 = ssub.s32 %s15, %s22
      %p24 = scmp.eq.s32.totalorder %s23, 0
      %s26 = sadd.s32 %s25, 1
      %s27 = scalar_select %p24, %s25, %s26
      %p30 = pneg %p24
      %p31 = scmp.eq.s32.totalorder %s15, 1
      %p32 = por %p30, %p31
      %p33 = scmp.ne.s32.totalorder %s25, %s28
      %p34 = scmp.eq.s32.totalorder %s15, 0
      %p35 = por %p33, %p34
      %p36 = scmp.ne.s32.totalorder %s25, %s28
      %p37 = scmp.eq.s32.totalorder %s20, 1
      %p38 = por %p36, %p37
      %p39 = scmp.ne.s32.totalorder %s28, %s29
      %p40 = scmp.eq.s32.totalorder %s20, 0
      %p41 = por %p39, %p40
      %p42 = scmp.ne.s32.totalorder %s28, %s29
      %p43 = scmp.eq.s32.totalorder %s21, 1
      %p44 = por %p42, %p43
      %p46 = scmp.ne.s32.totalorder %s29, %s45
      %p47 = scmp.eq.s32.totalorder %s21, 0
      %p48 = por %p46, %p47
      %s50 = sadd.s32 %s49, 1
      %p53 = scmp.eq.s32.totalorder %s15, 1
      %p54 = scmp.ne.s32.totalorder %s49, %s51
      %p55 = scmp.eq.s32.totalorder %s15, 0
      %p56 = por %p54, %p55
      %p57 = scmp.ne.s32.totalorder %s49, %s51
      %p58 = scmp.eq.s32.totalorder %s20, 1
      %p59 = por %p57, %p58
      %p60 = scmp.ne.s32.totalorder %s51, %s52
      %p61 = scmp.eq.s32.totalorder %s20, 0
      %p62 = por %p60, %p61
      %p63 = scmp.ne.s32.totalorder %s51, %s52
      %p64 = scmp.eq.s32.totalorder %s21, 1
      %p65 = por %p63, %p64
      %p67 = scmp.ne.s32.totalorder %s52, %s66
      %p68 = scmp.eq.s32.totalorder %s21, 0
      %p69 = por %p67, %p68
      %s71 = sadd.s32 %s70, 1
      %p74 = scmp.eq.s32.totalorder %s15, 1
      %p75 = scmp.ne.s32.totalorder %s70, %s72
      %p76 = scmp.eq.s32.totalorder %s15, 0
      %p77 = por %p75, %p76
      %p78 = scmp.ne.s32.totalorder %s70, %s72
      %p79 = scmp.eq.s32.totalorder %s20, 1
      %p80 = por %p78, %p79
      %p81 = scmp.ne.s32.totalorder %s72, %s73
      %p82 = scmp.eq.s32.totalorder %s20, 0
      %p83 = por %p81, %p82
      %p84 = scmp.ne.s32.totalorder %s72, %s73
      %p85 = scmp.eq.s32.totalorder %s21, 1
      %p86 = por %p84, %p85
      %p88 = scmp.ne.s32.totalorder %s73, %s87
      %p89 = scmp.eq.s32.totalorder %s21, 0
      %p90 = por %p88, %p89
      %s92 = sadd.s32 %s91, 1
      %p95 = scmp.eq.s32.totalorder %s15, 1
      %p96 = scmp.ne.s32.totalorder %s91, %s93
      %p97 = scmp.eq.s32.totalorder %s15, 0
      %p98 = por %p96, %p97
      %p99 = scmp.ne.s32.totalorder %s91, %s93
      %p100 = scmp.eq.s32.totalorder %s20, 1
      %p101 = por %p99, %p100
      %p102 = scmp.ne.s32.totalorder %s93, %s94
      %p103 = scmp.eq.s32.totalorder %s20, 0
      %p104 = por %p102, %p103
      %p105 = scmp.ne.s32.totalorder %s93, %s94
      %p106 = scmp.eq.s32.totalorder %s21, 1
      %p107 = por %p105, %p106
      %p109 = scmp.ne.s32.totalorder %s94, %s108
      %p110 = scmp.eq.s32.totalorder %s21, 0
      %p111 = por %p109, %p110
      %s113 = sadd.s32 %s112, 1
      %p116 = scmp.eq.s32.totalorder %s15, 1
      %p117 = scmp.ne.s32.totalorder %s112, %s114
      %p118 = scmp.eq.s32.totalorder %s15, 0
      %p119 = por %p117, %p118
      %p120 = scmp.ne.s32.totalorder %s112, %s114
      %p121 = scmp.eq.s32.totalorder %s20, 1
      %p122 = por %p120, %p121
      %p123 = scmp.ne.s32.totalorder %s114, %s115
      %p124 = scmp.eq.s32.totalorder %s20, 0
      %p125 = por %p123, %p124
      %p126 = scmp.ne.s32.totalorder %s114, %s115
      %p127 = scmp.eq.s32.totalorder %s21, 1
      %p128 = por %p126, %p127
      %p130 = scmp.ne.s32.totalorder %s115, %s129
      %p131 = scmp.eq.s32.totalorder %s21, 0
      %p132 = por %p130, %p131
      %s133 = ssub.s32 %s15, %s22
      %p134 = scmp.eq.s32.totalorder %s133, 0
      %s136 = sadd.s32 %s135, 1
      %s137 = scalar_select %p134, %s135, %s136
      %p140 = pneg %p134
      %p141 = scmp.eq.s32.totalorder %s15, 1
      %p142 = por %p140, %p141
      %p143 = scmp.ne.s32.totalorder %s135, %s138
      %p144 = scmp.eq.s32.totalorder %s15, 0
      %p145 = por %p143, %p144
      %p146 = scmp.ne.s32.totalorder %s135, %s138
      %p147 = scmp.eq.s32.totalorder %s20, 1
      %p148 = por %p146, %p147
      %p149 = scmp.ne.s32.totalorder %s138, %s139
      %p150 = scmp.eq.s32.totalorder %s20, 0
      %p151 = por %p149, %p150
      %p152 = scmp.ne.s32.totalorder %s138, %s139
      %p153 = scmp.eq.s32.totalorder %s21, 1
      %p154 = por %p152, %p153
      %p156 = scmp.ne.s32.totalorder %s139, %s155
      %p157 = scmp.eq.s32.totalorder %s21, 0
      %p158 = por %p156, %p157
      %p159 = scmp.le.s32.totalorder 1, %s15
      %p160 = scmp.lt.s32.totalorder %s15, 3
      %p161 = pnand %p159, %p160
      %p162 = pneg %p161
      // Predicated region
      $region9: #{transition_forward.1} parent=5 // pred_check
        _
      $region10: #{transition_forward.1} parent=5 // pred_check_branch
        %164 = sbr.rel (%p161) target = $region12
      $region11: #{transition_forward.1} parent=5 // pred_region
        %s165 = ssub.s32 %s15, 1
        // Predicated region
        $region13: #{transition_forward.1} parent=11 // pred_check
          %p166 = pneg %p62
        $region14: #{transition_forward.1} parent=11 // pred_check_branch
          %168 = sbr.rel (%p166) target = $region16
        $region15: #{transition_forward.1} parent=11 // pred_region
          _
        $region16: #{transition_forward.1} parent=11 // pred_fallthru
          _
        // Predicated region
        $region17: #{transition_forward.1} parent=11 // pred_check
          %p169 = pneg %p83
        $region18: #{transition_forward.1} parent=11 // pred_check_branch
          %171 = sbr.rel (%p169) target = $region20
        $region19: #{transition_forward.1} parent=11 // pred_region
          _
        $region20: #{transition_forward.1} parent=11 // pred_fallthru
          _
        // Predicated region
        $region21: #{transition_forward.1} parent=11 // pred_check
          %p172 = pneg %p104
        $region22: #{transition_forward.1} parent=11 // pred_check_branch
          %174 = sbr.rel (%p172) target = $region24
        $region23: #{transition_forward.1} parent=11 // pred_region
          _
        $region24: #{transition_forward.1} parent=11 // pred_fallthru
          _
        // Predicated region
        $region25: #{transition_forward.1} parent=11 // pred_check
          %p175 = pneg %p125
        $region26: #{transition_forward.1} parent=11 // pred_check_branch
          %177 = sbr.rel (%p175) target = $region28
        $region27: #{transition_forward.1} parent=11 // pred_region
          %s179 = ssub.s32 128, 128
          %180 = vsyncadd [#allocation4], %s179
          %s182 = sshll.u32 %s4, 4
          %s183 = int_to_ptr.vmem [resolvable:$true] %s182
          %185 = dma.vmem_to_smem %s183, 128, [#allocation2], [#allocation4]
        $region28: #{transition_forward.1} parent=11 // pred_fallthru
          _
      $region12: #{transition_forward.1} parent=5 // pred_fallthru
        _
      %p186 = scmp.lt.s32.totalorder %s15, 2
      // Predicated region
      $region29: #{transition_forward.1} parent=5 // pred_check
        %p187 = pneg %p186
      $region30: #{transition_forward.1} parent=5 // pred_check_branch
        %189 = sbr.rel (%p187) target = $region32
      $region31: #{transition_forward.1} parent=5 // pred_region
        // Predicated region
        $region33: #{transition_forward.1} parent=31 // pred_check
          %p190 = pneg %p35
        $region34: #{transition_forward.1} parent=31 // pred_check_branch
          %192 = sbr.rel (%p190) target = $region36
        $region35: #{transition_forward.1} parent=31 // pred_region
          %p193 = scmp.lt.s32.totalorder %s15, 1
          %s194 = scalar_select %p193, %s15, 1
          %s195 = smul.addr %s194, 4
          %s196 = smul.addr %s195, 8
          %s197 = scalar_lea.vmem %s0, %s196
        $region36: #{transition_forward.1} parent=31 // pred_fallthru
          _
      $region32: #{transition_forward.1} parent=5 // pred_fallthru
        _
      %p198 = scmp.le.s32.totalorder 1, %s15
      %p199 = scmp.lt.s32.totalorder %s15, 3
      %p200 = pnand %p198, %p199
      %p201 = pneg %p200
      // Predicated region
      $region37: #{transition_forward.1} parent=5 // pred_check
        _
      $region38: #{transition_forward.1} parent=5 // pred_check_branch
        %203 = sbr.rel (%p200) target = $region40
      $region39: #{transition_forward.1} parent=5 // pred_region
        %s204 = ssub.s32 %s15, 1
        // Predicated region
        $region41: #{transition_forward.1} parent=39 // pred_check
          %p205 = pneg %p125
        $region42: #{transition_forward.1} parent=39 // pred_check_branch
          %207 = sbr.rel (%p205) target = $region44
        $region43: #{transition_forward.1} parent=39 // pred_region
          %208 = dma.done [#allocation4], 128
        $region44: #{transition_forward.1} parent=39 // pred_fallthru
          _
        %209 = sfence
        %p210 = scmp.lt.s32.totalorder %s20, 1
        %s211 = scalar_select %p210, %s20, 1
        %s212 = smul.addr %s211, 4
        %s213 = smul.addr %s212, 8
        %s214 = scalar_lea.vmem %s0, %s213
        %p215 = pneg %p41
        %p216 = pneg %p38
        %p217 = pneg %p62
        %p218 = pneg %p59
        %p219 = pneg %p83
        %p220 = pneg %p80
        %p221 = pneg %p104
        %p222 = pneg %p101
        %p223 = pneg %p125
        %p224 = pneg %p122
        %p225 = pneg %p151
        %p226 = pneg %p148
        %s227 = sand.u32 %s138, 1
        %s228 = scalar_lea.sflag [#allocation3], %s227
        %s229 = sand.u32 %s138, 1
        %s230 = smul.addr %s229, 64
        %s231 = scalar_lea.vmem [#allocation5], %s230
        %p232 = scmp.lt.s32.totalorder %s20, 1
        %s233 = scalar_select %p232, %s20, 1
        %s234 = smul.addr %s233, 4
        %s235 = smul.addr %s234, 8
        %s236 = scalar_lea.vmem %s0, %s235
        %v238 = vld [vmem:[%s236] sm:$0xff]
        %v239 = vld [vmem:[%s236 + $0x8] sm:$0xff]
        %v240 = vld [vmem:[%s236 + $0x10] sm:$0xff]
        %v241 = vld [vmem:[%s236 + $0x18] sm:$0xff]
        %v242 = vld [vmem:[%s1] sm:$0xff]
        %v243 = vld [vmem:[%s1 + $0x8] sm:$0xff]
        %v244 = vld [vmem:[%s1 + $0x10] sm:$0xff]
        %v245 = vld [vmem:[%s1 + $0x18] sm:$0xff]
        %247 = vset.pattern.permute.xlu0 0
        %248 = vperm.xlu0 %247, %v242
        %v249 = vpop.permute.xlu0 %248
        %252 = vset.pattern.permute.xlu0 0
        %253 = vperm.xlu0 %252, %v243
        %v254 = vpop.permute.xlu0 %253
        %257 = vset.pattern.permute.xlu0 0
        %258 = vperm.xlu0 %257, %v244
        %v259 = vpop.permute.xlu0 %258
        %262 = vset.pattern.permute.xlu0 0
        %263 = vperm.xlu0 %262, %v245
        %v264 = vpop.permute.xlu0 %263
        %v266 = vmul.f32 %v238, %v249
        %v267 = vmul.f32 %v239, %v254
        %v268 = vmul.f32 %v240, %v259
        %v269 = vmul.f32 %v241, %v264
        %v270 = vld [vmem:[%s2] sm:$0xff]
        %v271 = vld [vmem:[%s2 + $0x8] sm:$0xff]
        %v272 = vld [vmem:[%s2 + $0x10] sm:$0xff]
        %v273 = vld [vmem:[%s2 + $0x18] sm:$0xff]
        %275 = vset.pattern.permute.xlu0 0
        %276 = vperm.xlu0 %275, %v270
        %v277 = vpop.permute.xlu0 %276
        %280 = vset.pattern.permute.xlu0 0
        %281 = vperm.xlu0 %280, %v271
        %v282 = vpop.permute.xlu0 %281
        %285 = vset.pattern.permute.xlu0 0
        %286 = vperm.xlu0 %285, %v272
        %v287 = vpop.permute.xlu0 %286
        %290 = vset.pattern.permute.xlu0 0
        %291 = vperm.xlu0 %290, %v273
        %v292 = vpop.permute.xlu0 %291
        %v294 = vadd.f32 %v266, %v277
        %v295 = vadd.f32 %v267, %v282
        %v296 = vadd.f32 %v268, %v287
        %v297 = vadd.f32 %v269, %v292
        %v298 = vmax.f32 %v294, 0.0
        %v299 = vmax.f32 %v295, 0.0
        %v300 = vmax.f32 %v296, 0.0
        %v301 = vmax.f32 %v297, 0.0
        %306 = vrot.lane.b32.xlu0 %v298, 112
        %v307 = vpop.permute.xlu0 %306
        %308 = vrot.lane.b32.xlu0 %v299, 112
        %v309 = vpop.permute.xlu0 %308
        %310 = vrot.lane.b32.xlu0 %v300, 112
        %v311 = vpop.permute.xlu0 %310
        %312 = vrot.lane.b32.xlu0 %v301, 112
        %v313 = vpop.permute.xlu0 %312
        %v318 = vadd.f32 %v298, %v307
        %v319 = vadd.f32 %v299, %v309
        %v320 = vadd.f32 %v300, %v311
        %v321 = vadd.f32 %v301, %v313
        %v322 = vpack.c.bf16 %v319, %v318
        %v323 = vpack.c.bf16 %v321, %v320
        %v324 = vld [vmem:[%s3] sm:$0xf]
        %v325 = vld [vmem:[%s3 + $0x4] sm:$0xf]
        %v328 = vunpack.c.l.b16 %v324
        %v329 = vunpack.c.l.b16 %v325
        %v330 = vpack.c.b16 %v329, %v328
        %vm332 = vcmask 130048
        %v334 = vsel %vm332, %v322, 0
        %v337 = vsel %vm332, %v323, 0
        %339 = vmatprep.subr.bf16.mxu0 0
        %340 = vmatpush1.bf16.msra.mxu0 %v330
        %341 = vmatprep.subr.bf16.mxu0 0
        %342 = vmatpush1.bf16.msra.mxu0 0
        %343 = vmatprep.subr.bf16.mxu0 0
        %344 = vmatpush1.bf16.msra.mxu0 0
        %345 = vmatprep.subr.bf16.mxu0 0
        %346 = vmatpush1.bf16.msra.mxu0 0
        %347 = vmatprep.subr.bf16.mxu0 0
        %348 = vmatpush1.bf16.msra.mxu0 0
        %349 = vmatprep.subr.bf16.mxu0 0
        %350 = vmatpush1.bf16.msra.mxu0 0
        %351 = vmatprep.subr.bf16.mxu0 0
        %352 = vmatpush1.bf16.msra.mxu0 0
        %353 = vmatprep.subr.bf16.mxu0 0
        %354 = vmatpush1.bf16.msra.mxu0 0
        %355 = vmatprep.subr.bf16.mxu0 0
        %356 = vmatpush1.bf16.msra.mxu0 0
        %357 = vmatprep.subr.bf16.mxu0 0
        %358 = vmatpush1.bf16.msra.mxu0 0
        %359 = vmatprep.subr.bf16.mxu0 0
        %360 = vmatpush1.bf16.msra.mxu0 0
        %361 = vmatprep.subr.bf16.mxu0 0
        %362 = vmatpush1.bf16.msra.mxu0 0
        %363 = vmatprep.subr.bf16.mxu0 0
        %364 = vmatpush1.bf16.msra.mxu0 0
        %365 = vmatprep.subr.bf16.mxu0 0
        %366 = vmatpush1.bf16.msra.mxu0 0
        %367 = vmatprep.subr.bf16.mxu0 0
        %368 = vmatpush1.bf16.msra.mxu0 0
        %369 = vmatprep.subr.bf16.mxu0 0
        %370 = vmatpush1.bf16.msra.mxu0 0
        %371 = vmatprep.mubr.bf16.mxu0 0
        %372 = vmatmul.mubr.bf16.gmra.mrb[0].mxu0 %v334
        %v373 = vpop.f32.mrb[0].mxu0
        %v374 = vadd.f32 0.0, %v373
        %v375 = vpop.f32.mrb[0].mxu0
        %v376 = vpop.f32.mrb[0].mxu0
        %v377 = vadd.f32 0.0, %v376
        %v378 = vpop.f32.mrb[0].mxu0
        %379 = vmatprep.mubr.bf16.mxu0 0
        %380 = vmatmul.mubr.bf16.gmra.mrb[0].mxu0 %v337
        %v381 = vpop.f32.mrb[0].mxu0
        %v382 = vadd.f32 0.0, %v381
        %v383 = vpop.f32.mrb[0].mxu0
        %v384 = vpop.f32.mrb[0].mxu0
        %v385 = vadd.f32 0.0, %v384
        %v386 = vpop.f32.mrb[0].mxu0
        %387 = vdwg.mxu0
        %s388 = sld [smem:[#allocation2]]
        %v389 = vstv %s388
        %v390 = vmul.f32 %v389, %v374
        %s391 = sld [smem:[#allocation2 + $0x1]]
        %v392 = vstv %s391
        %v393 = vmul.f32 %v392, %v377
        %v394 = vadd.f32 %v390, %v393
        %s395 = sld [smem:[#allocation2 + $0x2]]
        %v396 = vstv %s395
        %v397 = vmul.f32 %v396, %v382
        %v398 = vadd.f32 %v394, %v397
        %s399 = sld [smem:[#allocation2 + $0x3]]
        %v400 = vstv %s399
        %v401 = vmul.f32 %v400, %v385
        %v402 = vadd.f32 %v398, %v401
        %s403 = sld [smem:[#allocation2 + $0x80]]
        %v404 = vstv %s403
        %v405 = vmul.f32 %v404, %v374
        %s406 = sld [smem:[#allocation2 + $0x81]]
        %v407 = vstv %s406
        %v408 = vmul.f32 %v407, %v377
        %v409 = vadd.f32 %v405, %v408
        %s410 = sld [smem:[#allocation2 + $0x82]]
        %v411 = vstv %s410
        %v412 = vmul.f32 %v411, %v382
        %v413 = vadd.f32 %v409, %v412
        %s414 = sld [smem:[#allocation2 + $0x83]]
        %v415 = vstv %s414
        %v416 = vmul.f32 %v415, %v385
        %v417 = vadd.f32 %v413, %v416
        %s418 = sld [smem:[#allocation2 + $0x100]]
        %v419 = vstv %s418
        %v420 = vmul.f32 %v419, %v374
        %s421 = sld [smem:[#allocation2 + $0x101]]
        %v422 = vstv %s421
        %v423 = vmul.f32 %v422, %v377
        %v424 = vadd.f32 %v420, %v423
        %s425 = sld [smem:[#allocation2 + $0x102]]
        %v426 = vstv %s425
        %v427 = vmul.f32 %v426, %v382
        %v428 = vadd.f32 %v424, %v427
        %s429 = sld [smem:[#allocation2 + $0x103]]
        %v430 = vstv %s429
        %v431 = vmul.f32 %v430, %v385
        %v432 = vadd.f32 %v428, %v431
        %s433 = sld [smem:[#allocation2 + $0x180]]
        %v434 = vstv %s433
        %v435 = vmul.f32 %v434, %v374
        %s436 = sld [smem:[#allocation2 + $0x181]]
        %v437 = vstv %s436
        %v438 = vmul.f32 %v437, %v377
        %v439 = vadd.f32 %v435, %v438
        %s440 = sld [smem:[#allocation2 + $0x182]]
        %v441 = vstv %s440
        %v442 = vmul.f32 %v441, %v382
        %v443 = vadd.f32 %v439, %v442
        %s444 = sld [smem:[#allocation2 + $0x183]]
        %v445 = vstv %s444
        %v446 = vmul.f32 %v445, %v385
        %v447 = vadd.f32 %v443, %v446
        %s448 = sld [smem:[#allocation2 + $0x200]]
        %v449 = vstv %s448
        %v450 = vmul.f32 %v449, %v374
        %s451 = sld [smem:[#allocation2 + $0x201]]
        %v452 = vstv %s451
        %v453 = vmul.f32 %v452, %v377
        %v454 = vadd.f32 %v450, %v453
        %s455 = sld [smem:[#allocation2 + $0x202]]
        %v456 = vstv %s455
        %v457 = vmul.f32 %v456, %v382
        %v458 = vadd.f32 %v454, %v457
        %s459 = sld [smem:[#allocation2 + $0x203]]
        %v460 = vstv %s459
        %v461 = vmul.f32 %v460, %v385
        %v462 = vadd.f32 %v458, %v461
        %s463 = sld [smem:[#allocation2 + $0x280]]
        %v464 = vstv %s463
        %v465 = vmul.f32 %v464, %v374
        %s466 = sld [smem:[#allocation2 + $0x281]]
        %v467 = vstv %s466
        %v468 = vmul.f32 %v467, %v377
        %v469 = vadd.f32 %v465, %v468
        %s470 = sld [smem:[#allocation2 + $0x282]]
        %v471 = vstv %s470
        %v472 = vmul.f32 %v471, %v382
        %v473 = vadd.f32 %v469, %v472
        %s474 = sld [smem:[#allocation2 + $0x283]]
        %v475 = vstv %s474
        %v476 = vmul.f32 %v475, %v385
        %v477 = vadd.f32 %v473, %v476
        %s478 = sld [smem:[#allocation2 + $0x300]]
        %v479 = vstv %s478
        %v480 = vmul.f32 %v479, %v374
        %s481 = sld [smem:[#allocation2 + $0x301]]
        %v482 = vstv %s481
        %v483 = vmul.f32 %v482, %v377
        %v484 = vadd.f32 %v480, %v483
        %s485 = sld [smem:[#allocation2 + $0x302]]
        %v486 = vstv %s485
        %v487 = vmul.f32 %v486, %v382
        %v488 = vadd.f32 %v484, %v487
        %s489 = sld [smem:[#allocation2 + $0x303]]
        %v490 = vstv %s489
        %v491 = vmul.f32 %v490, %v385
        %v492 = vadd.f32 %v488, %v491
        %s493 = sld [smem:[#allocation2 + $0x380]]
        %v494 = vstv %s493
        %v495 = vmul.f32 %v494, %v374
        %s496 = sld [smem:[#allocation2 + $0x381]]
        %v497 = vstv %s496
        %v498 = vmul.f32 %v497, %v377
        %v499 = vadd.f32 %v495, %v498
        %s500 = sld [smem:[#allocation2 + $0x382]]
        %v501 = vstv %s500
        %v502 = vmul.f32 %v501, %v382
        %v503 = vadd.f32 %v499, %v502
        %s504 = sld [smem:[#allocation2 + $0x383]]
        %v505 = vstv %s504
        %v506 = vmul.f32 %v505, %v385
        %v507 = vadd.f32 %v503, %v506
        %vm508 = vcmask 64512
        %509 = vst.msk [vmem:[%s231] sm:$0xff] %vm508, %v402
        %510 = vst.msk [vmem:[%s231 + $0x8] sm:$0xff] %vm508, %v417
        %511 = vst.msk [vmem:[%s231 + $0x10] sm:$0xff] %vm508, %v432
        %512 = vst.msk [vmem:[%s231 + $0x18] sm:$0xff] %vm508, %v447
        %513 = vst.msk [vmem:[%s231 + $0x20] sm:$0xff] %vm508, %v462
        %514 = vst.msk [vmem:[%s231 + $0x28] sm:$0xff] %vm508, %v477
        %515 = vst.msk [vmem:[%s231 + $0x30] sm:$0xff] %vm508, %v492
        %516 = vst.msk [vmem:[%s231 + $0x38] sm:$0xff] %vm508, %v507
        %s517 = sand.u32 %s138, 1
        %s518 = scalar_lea.sflag [#allocation3], %s517
        %s519 = sand.u32 %s138, 1
        %s520 = smul.addr %s519, 64
        %s521 = scalar_lea.vmem [#allocation5], %s520
        // Predicated region
        $region45: #{transition_forward.1} parent=39 // pred_check
          %p522 = pneg %p148
        $region46: #{transition_forward.1} parent=39 // pred_check_branch
          %524 = sbr.rel (%p522) target = $region48
        $region47: #{transition_forward.1} parent=39 // pred_region
          %s526 = ssub.s32 1024, 1024
          %527 = vsyncadd %s518, %s526
          %s528 = smul.addr %s20, 8
          %s529 = smul.addr %s528, 128
          %s530 = scalar_lea.hbm %s5, %s529
          %s531 = sshll.u32 %s521, 4
          %s532 = int_to_ptr.vmem [resolvable:$true] %s531
          %537 = dma.vmem_to_hbm [thread:$0]  %s532, 1024, %s530, %s518, 128, 128, 8
        $region48: #{transition_forward.1} parent=39 // pred_fallthru
          _
      $region40: #{transition_forward.1} parent=5 // pred_fallthru
        _
      %p538 = scmp.le.s32.totalorder 2, %s15
      // Predicated region
      $region49: #{transition_forward.1} parent=5 // pred_check
        %p539 = pneg %p538
      $region50: #{transition_forward.1} parent=5 // pred_check_branch
        %541 = sbr.rel (%p539) target = $region52
      $region51: #{transition_forward.1} parent=5 // pred_region
        %s542 = ssub.s32 %s15, 2
        // Predicated region
        $region53: #{transition_forward.1} parent=51 // pred_check
          %p543 = pneg %p154
        $region54: #{transition_forward.1} parent=51 // pred_check_branch
          %545 = sbr.rel (%p543) target = $region56
        $region55: #{transition_forward.1} parent=51 // pred_region
          %s546 = sand.u32 %s139, 1
          %s547 = scalar_lea.sflag [#allocation3], %s546
          %s548 = sand.u32 %s139, 1
          %s549 = smul.addr %s548, 64
          %s550 = scalar_lea.vmem [#allocation5], %s549
          %551 = dma.done %s547, 1024
        $region56: #{transition_forward.1} parent=51 // pred_fallthru
          _
      $region52: #{transition_forward.1} parent=5 // pred_fallthru
        _
    $region6: #{transition_forward.1} parent=1 // loop_footer
      %s19 = sadd.s32 1, %s15
    $region7: #{transition_forward.1} parent=1 // loop_footer_branch
      %14 = sbr.rel target = $region3
    $region8: #{transition_forward.1} parent=1 // loop_exit
      _
    %552 = vsyncpa [#allocation3], 1
    %s553 = scalar_lea.sflag [#allocation3], 1
    %554 = vsyncpa %s553, 1
    %555 = vsyncpa [#allocation4], 1
    %s556 = scalar_lea.sflag [#allocation4], 1
    %557 = vsyncpa %s556, 1

</llo_original>
